<compile_context>
chip_gen: v7x
topology: tpu7x:2x2x1
jax: 0.10.0
libtpu: 0.0.40
codegen_flags: <defaults>
</compile_context>

<pallas_src>
import functools
import math

import jax
import jax.numpy as jnp
from jax import lax
from jax.experimental import pallas as pl
from jax.experimental.pallas import tpu as pltpu

HIDDEN = 768        # BERT hidden size (implied by nn.LSTM(768, 100))
FFN = 1536          # synthetic BERT intermediate size
LSTM_H = 100        # nn.LSTM(768, 100)
LSTM_HP = 128       # lane-padded LSTM hidden; padding is mathematically inert
N_CLASSES = 3       # nn.Linear(100, 3)

_TM = 512                        # row tile for dense kernels (85% HBM roofline)
_VMEM_LIMIT = 32 * 1024 * 1024   # explicit cap; safe on v5e/v6e/v7x
_LN_EPS = 1e-12


def _row_tile(M, tm=_TM):
    """Row-block size: cap at TM, and split small M so grids have >=2 steps
    (keeps both TensorCores busy on v7x). Always 8-row aligned."""
    if M > tm:
        return tm
    if M >= 16 and M % 2 == 0 and (M // 2) % 8 == 0:
        return M // 2
    return M


def _pick_group(Ns, S):
    """Sentences per attention grid step: aim for G*S ~= 128 lanes (lane-dense
    scores) while keeping >=2 grid steps when the sentence count allows it."""
    target = max(1, 128 // max(S, 1))
    divisors = [g for g in range(1, Ns + 1) if Ns % g == 0 and g <= target]
    two_step = [g for g in divisors if Ns // g >= 2]
    return max(two_step) if two_step else max(divisors)


# ----------------------------- Pallas kernels -----------------------------

def _layernorm_kernel(x_ref, g_ref, b_ref, o_ref, *, eps):
    x = x_ref[...].astype(jnp.float32)
    mu = jnp.mean(x, axis=-1, keepdims=True)
    xc = x - mu
    var = jnp.mean(xc * xc, axis=-1, keepdims=True)
    o_ref[...] = ((xc * lax.rsqrt(var + eps)) * g_ref[...] + b_ref[...]
                  ).astype(o_ref.dtype)


def layernorm(x, g, b, eps=_LN_EPS, out_dtype=jnp.bfloat16):
    M, D = x.shape
    tm = _row_tile(M)
    return pl.pallas_call(
        functools.partial(_layernorm_kernel, eps=eps),
        out_shape=jax.ShapeDtypeStruct((M, D), out_dtype),
        grid=(pl.cdiv(M, tm),),
        in_specs=[
            pl.BlockSpec((tm, D), lambda i: (i, 0)),
            pl.BlockSpec((1, D), lambda i: (0, 0)),
            pl.BlockSpec((1, D), lambda i: (0, 0)),
        ],
        out_specs=pl.BlockSpec((tm, D), lambda i: (i, 0)),
        compiler_params=pltpu.CompilerParams(
            dimension_semantics=("parallel",),
            vmem_limit_bytes=_VMEM_LIMIT),
    )(x, g, b)


def _linear_kernel(x_ref, w_ref, b_ref, o_ref):
    y = jnp.dot(x_ref[...], w_ref[...], preferred_element_type=jnp.float32)
    o_ref[...] = (y + b_ref[...]).astype(o_ref.dtype)


def linear(x, w, b, out_dtype=jnp.bfloat16):
    M, K = x.shape
    N = w.shape[1]
    tm = _row_tile(M)
    return pl.pallas_call(
        _linear_kernel,
        out_shape=jax.ShapeDtypeStruct((M, N), out_dtype),
        grid=(pl.cdiv(M, tm),),
        in_specs=[
            pl.BlockSpec((tm, K), lambda i: (i, 0)),
            pl.BlockSpec((K, N), lambda i: (0, 0)),
            pl.BlockSpec((1, N), lambda i: (0, 0)),
        ],
        out_specs=pl.BlockSpec((tm, N), lambda i: (i, 0)),
        compiler_params=pltpu.CompilerParams(
            dimension_semantics=("parallel",),
            vmem_limit_bytes=_VMEM_LIMIT),
    )(x, w, b)


def _attn_block_kernel(x_ref, mask_ref, wqkv_ref, bqkv_ref, wo_ref, bo_ref,
                       g_ref, bt_ref, o_ref, *, scale, seq, eps):
    x = x_ref[...]                                           # [R, 768] bf16
    R, H = x.shape

    # fused QKV projection (weights resident in VMEM across the grid)
    qkv = jnp.dot(x, wqkv_ref[...], preferred_element_type=jnp.float32)
    qkv = qkv + bqkv_ref[...]
    q = qkv[:, 0 * H:1 * H].astype(jnp.bfloat16)
    k = qkv[:, 1 * H:2 * H].astype(jnp.bfloat16)
    v = qkv[:, 2 * H:3 * H].astype(jnp.bfloat16)

    # lane-dense scores over the flattened group: one [R,768]x[768,R] matmul
    # instead of G tiny [S,S] matmuls (fixes MXU lane underfill).
    s = lax.dot_general(q, k, (((1,), (1,)), ((), ())),
                        preferred_element_type=jnp.float32) * scale   # [R, R]

    # block-diagonal (cross-sentence) mask built in-kernel from iota
    row_sent = lax.broadcasted_iota(jnp.int32, (R, R), 0) // seq
    col_sent = lax.broadcasted_iota(jnp.int32, (R, R), 1) // seq
    s = jnp.where(row_sent == col_sent, s, -1e9)
    # key-padding additive bias per key column ([1, R]); no [S,S] HBM array
    s = s + (1.0 - mask_ref[0]) * -1e9

    m = jnp.max(s, axis=-1, keepdims=True)
    e = jnp.exp(s - m)
    p = e * pl.reciprocal(jnp.sum(e, axis=-1, keepdims=True), approx=True)

    a = jnp.dot(p.astype(jnp.bfloat16), v, preferred_element_type=jnp.float32)

    # output projection + residual + LayerNorm, still entirely in VMEM
    y = jnp.dot(a.astype(jnp.bfloat16), wo_ref[...],
                preferred_element_type=jnp.float32)
    y = y + bo_ref[...] + x.astype(jnp.float32)
    mu = jnp.mean(y, axis=-1, keepdims=True)
    yc = y - mu
    var = jnp.mean(yc * yc, axis=-1, keepdims=True)
    o_ref[...] = ((yc * lax.rsqrt(var + eps)) * g_ref[...] + bt_ref[...]
                  ).astype(o_ref.dtype)


def attention_block(x2, mask_r, p, *, S, G):
    M, H = x2.shape
    R = G * S
    ngrp = M // R
    return pl.pallas_call(
        functools.partial(_attn_block_kernel, scale=1.0 / math.sqrt(H),
                          seq=S, eps=_LN_EPS),
        out_shape=jax.ShapeDtypeStruct((M, H), jnp.bfloat16),
        grid=(ngrp,),
        in_specs=[
            pl.BlockSpec((R, H), lambda i: (i, 0)),
            pl.BlockSpec((1, 1, R), lambda i: (i, 0, 0)),
            # TODO(synk): on v7x, grid-invariant weight specs below could be
            # single-buffered (pipeline_mode=pl.Buffered(1)) if VMEM gets
            # tight; at these sizes double buffering still fits 32 MiB.
            pl.BlockSpec((H, 3 * H), lambda i: (0, 0)),
            pl.BlockSpec((1, 3 * H), lambda i: (0, 0)),
            pl.BlockSpec((H, H), lambda i: (0, 0)),
            pl.BlockSpec((1, H), lambda i: (0, 0)),
            pl.BlockSpec((1, H), lambda i: (0, 0)),
            pl.BlockSpec((1, H), lambda i: (0, 0)),
        ],
        out_specs=pl.BlockSpec((R, H), lambda i: (i, 0)),
        compiler_params=pltpu.CompilerParams(
            dimension_semantics=("parallel",),
            vmem_limit_bytes=_VMEM_LIMIT),
    )(x2, mask_r, p["w_qkv"], p["b_qkv"], p["wo"], p["bo"],
      p["ln1_g"], p["ln1_b"])


def _ffn_block_kernel(x_ref, w1_ref, b1_ref, w2_ref, b2_ref, g_ref, bt_ref,
                      o_ref, *, eps):
    x = x_ref[...]                                           # [TM, 768] bf16
    h = jnp.dot(x, w1_ref[...], preferred_element_type=jnp.float32) + b1_ref[...]
    h = jax.nn.gelu(h)                                       # [TM,1536] stays in VMEM
    y = jnp.dot(h.astype(jnp.bfloat16), w2_ref[...],
                preferred_element_type=jnp.float32) + b2_ref[...]
    y = y + x.astype(jnp.float32)                            # residual
    mu = jnp.mean(y, axis=-1, keepdims=True)
    yc = y - mu
    var = jnp.mean(yc * yc, axis=-1, keepdims=True)
    o_ref[...] = ((yc * lax.rsqrt(var + eps)) * g_ref[...] + bt_ref[...]
                  ).astype(o_ref.dtype)


def ffn_block(x2, p):
    M, H = x2.shape
    tm = _row_tile(M)
    return pl.pallas_call(
        functools.partial(_ffn_block_kernel, eps=_LN_EPS),
        out_shape=jax.ShapeDtypeStruct((M, H), jnp.bfloat16),
        grid=(pl.cdiv(M, tm),),
        in_specs=[
            pl.BlockSpec((tm, H), lambda i: (i, 0)),
            pl.BlockSpec((H, FFN), lambda i: (0, 0)),
            pl.BlockSpec((1, FFN), lambda i: (0, 0)),
            pl.BlockSpec((FFN, H), lambda i: (0, 0)),
            pl.BlockSpec((1, H), lambda i: (0, 0)),
            pl.BlockSpec((1, H), lambda i: (0, 0)),
            pl.BlockSpec((1, H), lambda i: (0, 0)),
        ],
        out_specs=pl.BlockSpec((tm, H), lambda i: (i, 0)),
        compiler_params=pltpu.CompilerParams(
            dimension_semantics=("parallel",),
            vmem_limit_bytes=_VMEM_LIMIT),
    )(x2, p["w1"], p["b1"], p["w2"], p["b2"], p["ln2_g"], p["ln2_b"])


def _lstm_head_kernel(gx_ref, lens_ref, whh_ref, wout_ref, bout_ref, o_ref,
                      h_ref, c_ref, *, t_chunk):
    @pl.when(pl.program_id(0) == 0)
    def _():
        h_ref[...] = jnp.zeros_like(h_ref)
        c_ref[...] = jnp.zeros_like(c_ref)

    t0 = pl.program_id(0) * t_chunk
    lens = lens_ref[...]                     # [B, 1] int32 (vector compare)
    HP = h_ref.shape[1]

    def step(t, carry):
        h, c = carry
        gates = gx_ref[t].astype(jnp.float32) + jnp.dot(
            h.astype(jnp.bfloat16), whh_ref[...],
            preferred_element_type=jnp.float32)
        i_g = jax.nn.sigmoid(gates[:, 0 * HP:1 * HP])
        f_g = jax.nn.sigmoid(gates[:, 1 * HP:2 * HP])
        g_g = jnp.tanh(gates[:, 2 * HP:3 * HP])
        o_g = jax.nn.sigmoid(gates[:, 3 * HP:4 * HP])
        c_new = f_g * c + i_g * g_g
        h_new = o_g * jnp.tanh(c_new)
        valid = (t0 + t) < lens              # packed-sequence masking, [B,1]
        h = jnp.where(valid, h_new, h)
        c = jnp.where(valid, c_new, c)
        return h, c

    h, c = lax.fori_loop(0, t_chunk, step, (h_ref[...], c_ref[...]), unroll=4)
    h_ref[...] = h
    c_ref[...] = c

    @pl.when(pl.program_id(0) == pl.num_programs(0) - 1)
    def _():
        logits = jnp.dot(h.astype(jnp.bfloat16), wout_ref[...],
                         preferred_element_type=jnp.float32) + bout_ref[...]
        o_ref[...] = logits.astype(o_ref.dtype)


def lstm_head(gates_x, lens2d, w_hh, w_out, b_out, *, t_chunk):
    Tp, B, G4 = gates_x.shape
    HP = w_hh.shape[0]
    return pl.pallas_call(
        functools.partial(_lstm_head_kernel, t_chunk=t_chunk),
        out_shape=jax.ShapeDtypeStruct((B, N_CLASSES), jnp.float32),
        grid=(Tp // t_chunk,),
        in_specs=[
            pl.BlockSpec((t_chunk, B, G4), lambda i: (i, 0, 0)),  # bf16 gate chunk
            pl.BlockSpec((B, 1), lambda i: (0, 0)),
            pl.BlockSpec((HP, G4), lambda i: (0, 0)),
            pl.BlockSpec((HP, N_CLASSES), lambda i: (0, 0)),
            pl.BlockSpec((1, N_CLASSES), lambda i: (0, 0)),
        ],
        out_specs=pl.BlockSpec((B, N_CLASSES), lambda i: (0, 0)),
        scratch_shapes=[pltpu.VMEM((B, LSTM_HP), jnp.float32),   # h carry
                        pltpu.VMEM((B, LSTM_HP), jnp.float32)],  # c carry
        compiler_params=pltpu.CompilerParams(
            dimension_semantics=("arbitrary",),   # sequential recurrence
            vmem_limit_bytes=_VMEM_LIMIT),
    )(gates_x, lens2d, w_hh, w_out, b_out)


# ----------------------------- parameters ----------------------------------

def init_params(key, vocab=64, max_pos=32):
    keys = jax.random.split(key, 24)
    it = iter(keys)

    def nrm(shape, s=0.02):
        return jax.random.normal(next(it), shape, jnp.float32) * s

    p = {}
    p["word_emb"] = nrm((vocab, HIDDEN))
    p["pos_emb"] = nrm((max_pos, HIDDEN))
    p["ln_emb_g"] = jnp.ones((1, HIDDEN), jnp.float32)
    p["ln_emb_b"] = jnp.zeros((1, HIDDEN), jnp.float32)

    wq, wk, wv = nrm((HIDDEN, HIDDEN)), nrm((HIDDEN, HIDDEN)), nrm((HIDDEN, HIDDEN))
    p["w_qkv"] = jnp.concatenate([wq, wk, wv], axis=1).astype(jnp.bfloat16)
    p["b_qkv"] = jnp.zeros((1, 3 * HIDDEN), jnp.float32)
    p["wo"] = nrm((HIDDEN, HIDDEN)).astype(jnp.bfloat16)
    p["bo"] = jnp.zeros((1, HIDDEN), jnp.float32)
    p["ln1_g"] = jnp.ones((1, HIDDEN), jnp.float32)
    p["ln1_b"] = jnp.zeros((1, HIDDEN), jnp.float32)
    p["w1"] = nrm((HIDDEN, FFN)).astype(jnp.bfloat16)
    p["b1"] = jnp.zeros((1, FFN), jnp.float32)
    p["w2"] = nrm((FFN, HIDDEN)).astype(jnp.bfloat16)
    p["b2"] = jnp.zeros((1, HIDDEN), jnp.float32)
    p["ln2_g"] = jnp.ones((1, HIDDEN), jnp.float32)
    p["ln2_b"] = jnp.zeros((1, HIDDEN), jnp.float32)

    # nn.LSTM(768, 100): weight_ih_l0 [400,768], weight_hh_l0 [400,100], biases [400]
    bound = 1.0 / math.sqrt(LSTM_H)

    def uni(shape):
        return jax.random.uniform(next(it), shape, jnp.float32, -bound, bound)

    w_ih = uni((4 * LSTM_H, HIDDEN))
    w_hh = uni((4 * LSTM_H, LSTM_H))
    b_ih = uni((4 * LSTM_H,))
    b_hh = uni((4 * LSTM_H,))
    w_out = uni((N_CLASSES, LSTM_H))          # nn.Linear(100, 3)
    b_out = uni((N_CLASSES,))

    # Lane-padded, kernel-friendly layouts. Padding is exact: padded hidden
    # units see zero weights/bias -> h=c=0 forever, and their zero outgoing
    # weights never influence real units or the logits.
    wih_p = jnp.zeros((HIDDEN, 4 * LSTM_HP), jnp.float32)
    whh_p = jnp.zeros((LSTM_HP, 4 * LSTM_HP), jnp.float32)
    b_p = jnp.zeros((1, 4 * LSTM_HP), jnp.float32)
    for g in range(4):  # PyTorch gate order: i, f, g, o
        wih_p = wih_p.at[:, g * LSTM_HP:g * LSTM_HP + LSTM_H].set(
            w_ih[g * LSTM_H:(g + 1) * LSTM_H, :].T)
        whh_p = whh_p.at[:LSTM_H, g * LSTM_HP:g * LSTM_HP + LSTM_H].set(
            w_hh[g * LSTM_H:(g + 1) * LSTM_H, :].T)
        b_p = b_p.at[0, g * LSTM_HP:g * LSTM_HP + LSTM_H].set(
            b_ih[g * LSTM_H:(g + 1) * LSTM_H] + b_hh[g * LSTM_H:(g + 1) * LSTM_H])
    p["w_ih"] = wih_p.astype(jnp.bfloat16)
    p["w_hh"] = whh_p.astype(jnp.bfloat16)
    p["b_lstm"] = b_p
    p["w_out"] = (jnp.zeros((LSTM_HP, N_CLASSES), jnp.float32)
                  .at[:LSTM_H, :].set(w_out.T)).astype(jnp.bfloat16)
    p["b_out"] = b_out.reshape(1, N_CLASSES)
    return p


# ----------------------------- forward pass --------------------------------

def disrobert_forward(params, ids, mask, token_type_ids, lengt):
    # token_type_ids accepted but unused: the PyTorch forward calls
    # `self.bertFineTuned(ids, attention_mask=mask)` without it.
    del token_type_ids
    Ns, S = ids.shape
    M = Ns * S

    # --- synthetic fine-tuned BERT (embeddings + 1 fused transformer layer) ---
    # TODO(synk): embedding gather stays in XLA (data-dependent gather).
    x = params["word_emb"][ids] + params["pos_emb"][None, :S, :]
    x2 = layernorm(x.reshape(M, HIDDEN), params["ln_emb_g"], params["ln_emb_b"])

    G = _pick_group(Ns, S)
    ngrp = Ns // G
    mask_r = mask.astype(jnp.float32).reshape(ngrp, 1, G * S)
    x2 = attention_block(x2, mask_r, params, S=S, G=G)   # fused QKV+attn+proj+add&LN
    x2 = ffn_block(x2, params)                           # fused FFN+residual+add&LN
    hidden_state = x2.reshape(Ns, S, HIDDEN)             # bertFineTuned(...)[0]

    # --- DisRoBERT head ---
    pooled_out = hidden_state[:, 0].astype(jnp.float32)  # [Ns, 768] (CLS)
    B = len(lengt)
    T = max(lengt)
    t_chunk = 8 if T <= 16 else 64
    Tp = ((T + t_chunk - 1) // t_chunk) * t_chunk
    # split_with_sizes(lengt) + pad_sequence(padding_value=-91, batch_first=True)
    # + .transpose(0,1)  ->  time-major [Tp, B, 768]
    batch_emb = jnp.full((Tp, B, HIDDEN), -91.0, jnp.float32)
    off = 0
    for b, L in enumerate(lengt):
        batch_emb = batch_emb.at[:L, b, :].set(pooled_out[off:off + L])
        off += L

    # Hoisted LSTM input projection (one pipelined matmul); gates stored bf16.
    gates_x = linear(batch_emb.reshape(Tp * B, HIDDEN).astype(jnp.bfloat16),
                     params["w_ih"], params["b_lstm"], out_dtype=jnp.bfloat16)
    gates_x = gates_x.reshape(Tp, B, 4 * LSTM_HP)
    lens2d = jnp.asarray(lengt, jnp.int32).reshape(B, 1)

    # pack_padded_sequence + LSTM + h_t.view(-1,100) + Linear(100,3), fused into
    # one length-masked recurrent kernel pipelined over time chunks.
    return lstm_head(gates_x, lens2d, params["w_hh"], params["w_out"],
                     params["b_out"], t_chunk=t_chunk)


if __name__ == "__main__":
    key = jax.random.PRNGKey(0)
    kp, kid, kmask = jax.random.split(key, 3)

    lengt = [3, 5]                # two documents of 3 and 5 sentences
    n_sent = sum(lengt)           # 8 sentences total
    seq_len = 8
    vocab = 64

    params = init_params(kp, vocab=vocab, max_pos=seq_len)
    ids = jax.random.randint(kid, (n_sent, seq_len), 0, vocab, dtype=jnp.int32)
    # attention mask: leading tokens valid, a couple of trailing pads per sentence
    valid_len = jax.random.randint(kmask, (n_sent, 1), seq_len - 2, seq_len + 1)
    mask = (jnp.arange(seq_len)[None, :] < valid_len).astype(jnp.int32)
    token_type_ids = jnp.zeros((n_sent, seq_len), jnp.int32)

    logits = disrobert_forward(params, ids, mask, token_type_ids, lengt)
    jax.block_until_ready(logits)
    assert logits.shape == (len(lengt), N_CLASSES), logits.shape
    assert bool(jnp.all(jnp.isfinite(logits)))
    print("KERNEL_OK")
</pallas_src>

<mosaic_0001>
module attributes {stable_mosaic.version = 11 : i64} {
  func.func @_layernorm_kernel(%arg0: i32, %arg1: memref<32x768xf32, #tpu.memory_space<vmem>>, %arg2: memref<1x768xf32, #tpu.memory_space<vmem>>, %arg3: memref<1x768xf32, #tpu.memory_space<vmem>>, %arg4: memref<32x768xbf16, #tpu.memory_space<vmem>>) attributes {dimension_semantics = [#tpu.dimension_semantics<parallel>], iteration_bounds = array<i64: 2>, scalar_prefetch = 0 : i64, scratch_operands = 0 : i64, tpu.core_type = #tpu.core_type<tc>, window_params = [{transform_indices = @transform_0, window_bounds = array<i64: 32, 768>}, {pipeline_mode = #tpu.pipeline_mode<synchronous>, transform_indices = @transform_1, window_bounds = array<i64: 1, 768>}, {pipeline_mode = #tpu.pipeline_mode<synchronous>, transform_indices = @transform_2, window_bounds = array<i64: 1, 768>}, {transform_indices = @transform_3, window_bounds = array<i64: 32, 768>}]} {
    %c0 = arith.constant 0 : index
    %c0_0 = arith.constant 0 : index
    %0 = vector.load %arg1[%c0, %c0_0] : memref<32x768xf32, #tpu.memory_space<vmem>>, vector<32x768xf32>
    %cst = arith.constant dense<0.000000e+00> : vector<32xf32>
    %1 = vector.multi_reduction <add>, %0, %cst [1] : vector<32x768xf32> to vector<32xf32>
    %2 = vector.shape_cast %1 : vector<32xf32> to vector<32x1xf32>
    %cst_1 = arith.constant 7.680000e+02 : f32
    %3 = vector.broadcast %cst_1 : f32 to vector<32x1xf32>
    %4 = arith.divf %2, %3 : vector<32x1xf32>
    %5 = vector.broadcast %4 : vector<32x1xf32> to vector<32x768xf32>
    %6 = arith.subf %0, %5 : vector<32x768xf32>
    %7 = arith.mulf %6, %6 : vector<32x768xf32>
    %cst_2 = arith.constant dense<0.000000e+00> : vector<32xf32>
    %8 = vector.multi_reduction <add>, %7, %cst_2 [1] : vector<32x768xf32> to vector<32xf32>
    %9 = vector.shape_cast %8 : vector<32xf32> to vector<32x1xf32>
    %cst_3 = arith.constant 7.680000e+02 : f32
    %10 = vector.broadcast %cst_3 : f32 to vector<32x1xf32>
    %11 = arith.divf %9, %10 : vector<32x1xf32>
    %cst_4 = arith.constant 9.99999996E-13 : f32
    %12 = vector.broadcast %cst_4 : f32 to vector<32x1xf32>
    %13 = arith.addf %11, %12 : vector<32x1xf32>
    %14 = math.rsqrt %13 : vector<32x1xf32>
    %15 = vector.broadcast %14 : vector<32x1xf32> to vector<32x768xf32>
    %16 = arith.mulf %6, %15 : vector<32x768xf32>
    %c0_5 = arith.constant 0 : index
    %c0_6 = arith.constant 0 : index
    %17 = vector.load %arg2[%c0_5, %c0_6] : memref<1x768xf32, #tpu.memory_space<vmem>>, vector<1x768xf32>
    %18 = vector.broadcast %17 : vector<1x768xf32> to vector<32x768xf32>
    %19 = arith.mulf %16, %18 : vector<32x768xf32>
    %c0_7 = arith.constant 0 : index
    %c0_8 = arith.constant 0 : index
    %20 = vector.load %arg3[%c0_7, %c0_8] : memref<1x768xf32, #tpu.memory_space<vmem>>, vector<1x768xf32>
    %21 = vector.broadcast %20 : vector<1x768xf32> to vector<32x768xf32>
    %22 = arith.addf %19, %21 : vector<32x768xf32>
    %23 = arith.truncf %22 : vector<32x768xf32> to vector<32x768xbf16>
    %c0_9 = arith.constant 0 : index
    %c0_10 = arith.constant 0 : index
    %24 = vector.load %arg4[%c0_9, %c0_10] : memref<32x768xbf16, #tpu.memory_space<vmem>>, vector<32x768xbf16>
    tpu.vector_store %arg4[%c0_9, %c0_10], %23 {strides = array<i32>} : memref<32x768xbf16, #tpu.memory_space<vmem>>, vector<32x768xbf16>,
    return
  }
  func.func @transform_0(%arg0: i32) -> (i32, i32) {
    %c0_i32 = arith.constant 0 : i32
    %c0_i32_0 = arith.constant 0 : i32
    return %arg0, %c0_i32 : i32, i32
  }
  func.func @transform_1(%arg0: i32) -> (i32, i32) {
    %c0_i32 = arith.constant 0 : i32
    %c0_i32_0 = arith.constant 0 : i32
    %c0_i32_1 = arith.constant 0 : i32
    return %c0_i32, %c0_i32_0 : i32, i32
  }
  func.func @transform_2(%arg0: i32) -> (i32, i32) {
    %c0_i32 = arith.constant 0 : i32
    %c0_i32_0 = arith.constant 0 : i32
    %c0_i32_1 = arith.constant 0 : i32
    return %c0_i32, %c0_i32_0 : i32, i32
  }
  func.func @transform_3(%arg0: i32) -> (i32, i32) {
    %c0_i32 = arith.constant 0 : i32
    %c0_i32_0 = arith.constant 0 : i32
    return %arg0, %c0_i32 : i32, i32
  }
}

</mosaic_0001>

<llo_original>
// kernel: tpu_custom_call.1
$region0: #{tpu_custom_call.1}
  #allocation0 [shape = 'u32[]', space=smem, size = 0x4, offset = 0x4, fixed_abs, tag = 'smem constant byte address 0x4 - core index']
  #allocation1 [shape = 'u32[144,128]{1,0:T(1,128)}', space=vmem, size = 0x12000, scoped, tag = 'internal scratch']
  %s0 = inlined_call_operand.hbm [shape: f32[64,768], index: 0, kind: input, shape index: {}]
  %s1 = inlined_call_operand.hbm [shape: f32[1,768], index: 1, kind: input, shape index: {}]
  %s2 = inlined_call_operand.vmem [shape: f32[1,768], index: 2, kind: input, shape index: {}]
  %s3 = inlined_call_operand.hbm [shape: bf16[64,768], index: 3, kind: output, shape index: {}]
  %s4 = sld [smem:[#allocation0]]
  $region53: #{tpu_custom_call.1} parent=0
    _
  %s6 = ssub.s32 1, %s4
  %s7 = scalar_select 0, %s6, %s4
  $region1: #{tpu_custom_call.1} parent=0
    #allocation2 [shape = 'u8[196608]{0}', space=vmem, size = 0x30000, scoped, tag = 'input window, operand 0']
    #allocation3 [shape = 's32[2]{0}', space=sflag, size = 0x8, scoped, tag = 'scoped memory for tpu_custom_call.1']
    #allocation4 [shape = 's32[2]{0}', space=sflag, size = 0x8, scoped, tag = 'scoped memory for tpu_custom_call.1']
    #allocation5 [shape = 'u8[3072]{0}', space=vmem, size = 0xc00, scoped, tag = 'input window, operand 1, single buffered']
    #allocation6 [shape = 's32[1]{0}', space=sflag, size = 0x4, scoped, tag = 'scoped memory for tpu_custom_call.1']
    #allocation7 [shape = 'u8[98304]{0}', space=vmem, size = 0x18000, scoped, tag = 'output window, operand 0']
    %8 = vsyncpa [#allocation3], 0
    %s9 = scalar_lea.sflag [#allocation3], 1
    %10 = vsyncpa %s9, 0
    %11 = vsyncpa [#allocation6], 0
    %12 = vsyncpa [#allocation4], 0
    %s13 = scalar_lea.sflag [#allocation4], 1
    %14 = vsyncpa %s13, 0
    loop: start=0, step=1, limit=4
    $region2: #{tpu_custom_call.1} parent=1 // loop_pre_header
      _
    $region3: #{tpu_custom_call.1} parent=1 // loop_header
      %s16 = sphi 0, %s20
      %p17 = scmp.ge.s32.totalorder %s16, 4
      %s26 = sphi 0, %s28
      %s29 = sphi 0, %s26
      %s30 = sphi 0, %s29
      %s46 = sphi 0, %s30
      %s50 = sphi 0, %s50
      %s52 = sphi 0, %s50
      %s53 = sphi 0, %s52
      %s67 = sphi 0, %s53
      %s71 = sphi 0, %s71
      %s73 = sphi 0, %s71
      %s74 = sphi 0, %s73
      %s88 = sphi 0, %s74
      %s94 = sphi 0, %s96
      %s97 = sphi 0, %s94
      %s98 = sphi 0, %s97
      %s114 = sphi 0, %s98
    $region4: #{tpu_custom_call.1} parent=1 // loop_header_branch
      %19 = sbr.rel (%p17) target = $region8
    $region5: #{tpu_custom_call.1} parent=1 // loop_body
      %s21 = ssub.s32 %s16, 1
      %s22 = ssub.s32 %s16, 2
      %s23 = sadd.s32 %s16, 1
      %s24 = ssub.s32 %s16, %s23
      %p25 = scmp.eq.s32.totalorder %s24, 0
      %s27 = sadd.s32 %s26, 1
      %s28 = scalar_select %p25, %s26, %s27
      %p31 = pneg %p25
      %p32 = scmp.eq.s32.totalorder %s16, 1
      %p33 = por %p31, %p32
      %p34 = scmp.ne.s32.totalorder %s26, %s29
      %p35 = scmp.eq.s32.totalorder %s16, 0
      %p36 = por %p34, %p35
      %p37 = scmp.ne.s32.totalorder %s26, %s29
      %p38 = scmp.eq.s32.totalorder %s21, 1
      %p39 = por %p37, %p38
      %p40 = scmp.ne.s32.totalorder %s29, %s30
      %p41 = scmp.eq.s32.totalorder %s21, 0
      %p42 = por %p40, %p41
      %p43 = scmp.ne.s32.totalorder %s29, %s30
      %p44 = scmp.eq.s32.totalorder %s22, 1
      %p45 = por %p43, %p44
      %p47 = scmp.ne.s32.totalorder %s30, %s46
      %p48 = scmp.eq.s32.totalorder %s22, 0
      %p49 = por %p47, %p48
      %s51 = sadd.s32 %s50, 1
      %p54 = scmp.eq.s32.totalorder %s16, 1
      %p55 = scmp.ne.s32.totalorder %s50, %s52
      %p56 = scmp.eq.s32.totalorder %s16, 0
      %p57 = por %p55, %p56
      %p58 = scmp.ne.s32.totalorder %s50, %s52
      %p59 = scmp.eq.s32.totalorder %s21, 1
      %p60 = por %p58, %p59
      %p61 = scmp.ne.s32.totalorder %s52, %s53
      %p62 = scmp.eq.s32.totalorder %s21, 0
      %p63 = por %p61, %p62
      %p64 = scmp.ne.s32.totalorder %s52, %s53
      %p65 = scmp.eq.s32.totalorder %s22, 1
      %p66 = por %p64, %p65
      %p68 = scmp.ne.s32.totalorder %s53, %s67
      %p69 = scmp.eq.s32.totalorder %s22, 0
      %p70 = por %p68, %p69
      %s72 = sadd.s32 %s71, 1
      %p75 = scmp.eq.s32.totalorder %s16, 1
      %p76 = scmp.ne.s32.totalorder %s71, %s73
      %p77 = scmp.eq.s32.totalorder %s16, 0
      %p78 = por %p76, %p77
      %p79 = scmp.ne.s32.totalorder %s71, %s73
      %p80 = scmp.eq.s32.totalorder %s21, 1
      %p81 = por %p79, %p80
      %p82 = scmp.ne.s32.totalorder %s73, %s74
      %p83 = scmp.eq.s32.totalorder %s21, 0
      %p84 = por %p82, %p83
      %p85 = scmp.ne.s32.totalorder %s73, %s74
      %p86 = scmp.eq.s32.totalorder %s22, 1
      %p87 = por %p85, %p86
      %p89 = scmp.ne.s32.totalorder %s74, %s88
      %p90 = scmp.eq.s32.totalorder %s22, 0
      %p91 = por %p89, %p90
      %s92 = ssub.s32 %s16, %s23
      %p93 = scmp.eq.s32.totalorder %s92, 0
      %s95 = sadd.s32 %s94, 1
      %s96 = scalar_select %p93, %s94, %s95
      %p99 = pneg %p93
      %p100 = scmp.eq.s32.totalorder %s16, 1
      %p101 = por %p99, %p100
      %p102 = scmp.ne.s32.totalorder %s94, %s97
      %p103 = scmp.eq.s32.totalorder %s16, 0
      %p104 = por %p102, %p103
      %p105 = scmp.ne.s32.totalorder %s94, %s97
      %p106 = scmp.eq.s32.totalorder %s21, 1
      %p107 = por %p105, %p106
      %p108 = scmp.ne.s32.totalorder %s97, %s98
      %p109 = scmp.eq.s32.totalorder %s21, 0
      %p110 = por %p108, %p109
      %p111 = scmp.ne.s32.totalorder %s97, %s98
      %p112 = scmp.eq.s32.totalorder %s22, 1
      %p113 = por %p111, %p112
      %p115 = scmp.ne.s32.totalorder %s98, %s114
      %p116 = scmp.eq.s32.totalorder %s22, 0
      %p117 = por %p115, %p116
      %p118 = scmp.le.s32.totalorder 1, %s16
      %p119 = scmp.lt.s32.totalorder %s16, 3
      %p120 = pnand %p118, %p119
      %p121 = pneg %p120
      // Predicated region
      $region9: #{tpu_custom_call.1} parent=5 // pred_check
        _
      $region10: #{tpu_custom_call.1} parent=5 // pred_check_branch
        %123 = sbr.rel (%p120) target = $region12
      $region11: #{tpu_custom_call.1} parent=5 // pred_region
        %s124 = ssub.s32 %s16, 1
        // Predicated region
        $region13: #{tpu_custom_call.1} parent=11 // pred_check
          %p125 = pneg %p63
        $region14: #{tpu_custom_call.1} parent=11 // pred_check_branch
          %127 = sbr.rel (%p125) target = $region16
        $region15: #{tpu_custom_call.1} parent=11 // pred_region
          %s129 = ssub.s32 96, 96
          %130 = vsyncadd [#allocation6], %s129
          %s132 = sshll.u32 [#allocation5], 4
          %s133 = int_to_ptr.vmem [resolvable:$true] %s132
          %135 = dma.hbm_to_vmem [thread:$0]  %s1, 96, %s133, [#allocation6]
        $region16: #{tpu_custom_call.1} parent=11 // pred_fallthru
          _
        // Predicated region
        $region17: #{tpu_custom_call.1} parent=11 // pred_check
          %p136 = pneg %p84
        $region18: #{tpu_custom_call.1} parent=11 // pred_check_branch
          %138 = sbr.rel (%p136) target = $region20
        $region19: #{tpu_custom_call.1} parent=11 // pred_region
          _
        $region20: #{tpu_custom_call.1} parent=11 // pred_fallthru
          _
      $region12: #{tpu_custom_call.1} parent=5 // pred_fallthru
        _
      %p139 = scmp.lt.s32.totalorder %s16, 2
      // Predicated region
      $region21: #{tpu_custom_call.1} parent=5 // pred_check
        %p140 = pneg %p139
      $region22: #{tpu_custom_call.1} parent=5 // pred_check_branch
        %142 = sbr.rel (%p140) target = $region24
      $region23: #{tpu_custom_call.1} parent=5 // pred_region
        // Predicated region
        $region25: #{tpu_custom_call.1} parent=23 // pred_check
          %p143 = pneg %p36
        $region26: #{tpu_custom_call.1} parent=23 // pred_check_branch
          %145 = sbr.rel (%p143) target = $region28
        $region27: #{tpu_custom_call.1} parent=23 // pred_region
          %s146 = sand.u32 %s26, 1
          %s147 = scalar_lea.sflag [#allocation3], %s146
          %s148 = sand.u32 %s26, 1
          %s149 = smul.addr %s148, 192
          %s150 = scalar_lea.vmem [#allocation2], %s149
          %s151 = smul.u32 4, %s16
          %s153 = ssub.s32 3072, 3072
          %154 = vsyncadd %s147, %s153
          %s155 = smul.addr %s151, 6
          %s156 = smul.addr %s155, 128
          %s157 = scalar_lea.hbm %s0, %s156
          %s158 = sshll.u32 %s150, 4
          %s159 = int_to_ptr.vmem [resolvable:$true] %s158
          %164 = dma.hbm_to_vmem [thread:$0]  %s157, 3072, %s159, %s147, 768, 768, 48
        $region28: #{tpu_custom_call.1} parent=23 // pred_fallthru
          _
      $region24: #{tpu_custom_call.1} parent=5 // pred_fallthru
        _
      %p165 = scmp.le.s32.totalorder 1, %s16
      %p166 = scmp.lt.s32.totalorder %s16, 3
      %p167 = pnand %p165, %p166
      %p168 = pneg %p167
      // Predicated region
      $region29: #{tpu_custom_call.1} parent=5 // pred_check
        _
      $region30: #{tpu_custom_call.1} parent=5 // pred_check_branch
        %170 = sbr.rel (%p167) target = $region32
      $region31: #{tpu_custom_call.1} parent=5 // pred_region
        %s171 = ssub.s32 %s16, 1
        %s172 = sand.u32 %s29, 1
        %s173 = scalar_lea.sflag [#allocation3], %s172
        %s174 = sand.u32 %s29, 1
        %s175 = smul.addr %s174, 192
        %s176 = scalar_lea.vmem [#allocation2], %s175
        // Predicated region
        $region33: #{tpu_custom_call.1} parent=31 // pred_check
          %p177 = pneg %p42
        $region34: #{tpu_custom_call.1} parent=31 // pred_check_branch
          %179 = sbr.rel (%p177) target = $region36
        $region35: #{tpu_custom_call.1} parent=31 // pred_region
          %180 = dma.done %s173, 3072
        $region36: #{tpu_custom_call.1} parent=31 // pred_fallthru
          _
        // Predicated region
        $region37: #{tpu_custom_call.1} parent=31 // pred_check
          %p181 = pneg %p63
        $region38: #{tpu_custom_call.1} parent=31 // pred_check_branch
          %183 = sbr.rel (%p181) target = $region40
        $region39: #{tpu_custom_call.1} parent=31 // pred_region
          %184 = dma.done [#allocation6], 96
        $region40: #{tpu_custom_call.1} parent=31 // pred_fallthru
          _
        %s185 = sand.u32 %s29, 1
        %s186 = scalar_lea.sflag [#allocation3], %s185
        %s187 = sand.u32 %s29, 1
        %s188 = smul.addr %s187, 192
        %s189 = scalar_lea.vmem [#allocation2], %s188
        %p190 = pneg %p42
        %p191 = pneg %p39
        %p192 = pneg %p63
        %p193 = pneg %p60
        %p194 = pneg %p84
        %p195 = pneg %p81
        %p196 = pneg %p110
        %p197 = pneg %p107
        %s198 = sand.u32 %s97, 1
        %s199 = scalar_lea.sflag [#allocation4], %s198
        %s200 = sand.u32 %s97, 1
        %s201 = smul.addr %s200, 96
        %s202 = scalar_lea.vmem [#allocation7], %s201
        %s203 = smul.u32 4, %s21
        %s204 = smul.u32 4, %s21
        %v205 = vld [vmem:[%s176] sm:$0xff]
        %v206 = vld [vmem:[%s176 + $0x8] sm:$0xff]
        %v207 = vld [vmem:[%s176 + $0x10] sm:$0xff]
        %v208 = vld [vmem:[%s176 + $0x18] sm:$0xff]
        %v209 = vld [vmem:[%s176 + $0x20] sm:$0xff]
        %v210 = vld [vmem:[%s176 + $0x28] sm:$0xff]
        %v211 = vld [vmem:[%s176 + $0x30] sm:$0xff]
        %v212 = vld [vmem:[%s176 + $0x38] sm:$0xff]
        %v213 = vld [vmem:[%s176 + $0x40] sm:$0xff]
        %v214 = vld [vmem:[%s176 + $0x48] sm:$0xff]
        %v215 = vld [vmem:[%s176 + $0x50] sm:$0xff]
        %v216 = vld [vmem:[%s176 + $0x58] sm:$0xff]
        %v217 = vld [vmem:[%s176 + $0x60] sm:$0xff]
        %v218 = vld [vmem:[%s176 + $0x68] sm:$0xff]
        %v219 = vld [vmem:[%s176 + $0x70] sm:$0xff]
        %v220 = vld [vmem:[%s176 + $0x78] sm:$0xff]
        %v221 = vld [vmem:[%s176 + $0x80] sm:$0xff]
        %v222 = vld [vmem:[%s176 + $0x88] sm:$0xff]
        %v223 = vld [vmem:[%s176 + $0x90] sm:$0xff]
        %v224 = vld [vmem:[%s176 + $0x98] sm:$0xff]
        %v225 = vld [vmem:[%s176 + $0xa0] sm:$0xff]
        %v226 = vld [vmem:[%s176 + $0xa8] sm:$0xff]
        %v227 = vld [vmem:[%s176 + $0xb0] sm:$0xff]
        %v228 = vld [vmem:[%s176 + $0xb8] sm:$0xff]
        %v229 = vadd.f32 %v205, %v206
        %v230 = vadd.f32 %v229, %v207
        %v231 = vadd.f32 %v230, %v208
        %v232 = vadd.f32 %v231, %v209
        %v233 = vadd.f32 %v232, %v210
        %234 = vadd.xlane.f32.xlu0 %v233
        %v235 = vpop.xlane.xlu0 %234
        %v236 = vadd.f32 %v211, %v212
        %v237 = vadd.f32 %v236, %v213
        %v238 = vadd.f32 %v237, %v214
        %v239 = vadd.f32 %v238, %v215
        %v240 = vadd.f32 %v239, %v216
        %241 = vadd.xlane.f32.xlu0 %v240
        %v242 = vpop.xlane.xlu0 %241
        %v243 = vadd.f32 %v217, %v218
        %v244 = vadd.f32 %v243, %v219
        %v245 = vadd.f32 %v244, %v220
        %v246 = vadd.f32 %v245, %v221
        %v247 = vadd.f32 %v246, %v222
        %248 = vadd.xlane.f32.xlu0 %v247
        %v249 = vpop.xlane.xlu0 %248
        %v250 = vadd.f32 %v223, %v224
        %v251 = vadd.f32 %v250, %v225
        %v252 = vadd.f32 %v251, %v226
        %v253 = vadd.f32 %v252, %v227
        %v254 = vadd.f32 %v253, %v228
        %255 = vadd.xlane.f32.xlu0 %v254
        %v256 = vpop.xlane.xlu0 %255
        %v257 = vrcp.pop 768.0
        %v258 = vmul.f32 %v235, %v257
        %v259 = vmul.f32 %v242, %v257
        %v260 = vmul.f32 %v249, %v257
        %v261 = vmul.f32 %v256, %v257
        %v262 = vsub.f32 %v205, %v258
        %v263 = vsub.f32 %v206, %v258
        %v264 = vsub.f32 %v207, %v258
        %v265 = vsub.f32 %v208, %v258
        %v266 = vsub.f32 %v209, %v258
        %v267 = vsub.f32 %v210, %v258
        %v268 = vsub.f32 %v211, %v259
        %v269 = vsub.f32 %v212, %v259
        %v270 = vsub.f32 %v213, %v259
        %v271 = vsub.f32 %v214, %v259
        %v272 = vsub.f32 %v215, %v259
        %v273 = vsub.f32 %v216, %v259
        %v274 = vsub.f32 %v217, %v260
        %v275 = vsub.f32 %v218, %v260
        %v276 = vsub.f32 %v219, %v260
        %v277 = vsub.f32 %v220, %v260
        %v278 = vsub.f32 %v221, %v260
        %v279 = vsub.f32 %v222, %v260
        %v280 = vsub.f32 %v223, %v261
        %v281 = vsub.f32 %v224, %v261
        %v282 = vsub.f32 %v225, %v261
        %v283 = vsub.f32 %v226, %v261
        %v284 = vsub.f32 %v227, %v261
        %v285 = vsub.f32 %v228, %v261
        %v286 = vmul.f32 %v262, %v262
        %v287 = vmul.f32 %v263, %v263
        %v288 = vmul.f32 %v264, %v264
        %v289 = vmul.f32 %v265, %v265
        %v290 = vmul.f32 %v266, %v266
        %v291 = vmul.f32 %v267, %v267
        %v292 = vmul.f32 %v268, %v268
        %v293 = vmul.f32 %v269, %v269
        %v294 = vmul.f32 %v270, %v270
        %v295 = vmul.f32 %v271, %v271
        %v296 = vmul.f32 %v272, %v272
        %v297 = vmul.f32 %v273, %v273
        %v298 = vmul.f32 %v274, %v274
        %v299 = vmul.f32 %v275, %v275
        %v300 = vmul.f32 %v276, %v276
        %v301 = vmul.f32 %v277, %v277
        %v302 = vmul.f32 %v278, %v278
        %v303 = vmul.f32 %v279, %v279
        %v304 = vmul.f32 %v280, %v280
        %v305 = vmul.f32 %v281, %v281
        %v306 = vmul.f32 %v282, %v282
        %v307 = vmul.f32 %v283, %v283
        %v308 = vmul.f32 %v284, %v284
        %v309 = vmul.f32 %v285, %v285
        %v310 = vadd.f32 %v286, %v287
        %v311 = vadd.f32 %v310, %v288
        %v312 = vadd.f32 %v311, %v289
        %v313 = vadd.f32 %v312, %v290
        %v314 = vadd.f32 %v313, %v291
        %315 = vadd.xlane.f32.xlu0 %v314
        %v316 = vpop.xlane.xlu0 %315
        %v317 = vadd.f32 %v292, %v293
        %v318 = vadd.f32 %v317, %v294
        %v319 = vadd.f32 %v318, %v295
        %v320 = vadd.f32 %v319, %v296
        %v321 = vadd.f32 %v320, %v297
        %322 = vadd.xlane.f32.xlu0 %v321
        %v323 = vpop.xlane.xlu0 %322
        %v324 = vadd.f32 %v298, %v299
        %v325 = vadd.f32 %v324, %v300
        %v326 = vadd.f32 %v325, %v301
        %v327 = vadd.f32 %v326, %v302
        %v328 = vadd.f32 %v327, %v303
        %329 = vadd.xlane.f32.xlu0 %v328
        %v330 = vpop.xlane.xlu0 %329
        %v331 = vadd.f32 %v304, %v305
        %v332 = vadd.f32 %v331, %v306
        %v333 = vadd.f32 %v332, %v307
        %v334 = vadd.f32 %v333, %v308
        %v335 = vadd.f32 %v334, %v309
        %336 = vadd.xlane.f32.xlu0 %v335
        %v337 = vpop.xlane.xlu0 %336
        %v338 = vmul.f32 %v316, %v257
        %v339 = vmul.f32 %v323, %v257
        %v340 = vmul.f32 %v330, %v257
        %v341 = vmul.f32 %v337, %v257
        %v342 = vadd.f32 %v338, 1e-12
        %v343 = vadd.f32 %v339, 1e-12
        %v344 = vadd.f32 %v340, 1e-12
        %v345 = vadd.f32 %v341, 1e-12
        %v346 = vrsqrt.pop %v342
        %v347 = vrsqrt.pop %v343
        %v348 = vrsqrt.pop %v344
        %v349 = vrsqrt.pop %v345
        %v350 = vmul.f32 %v262, %v346
        %v351 = vmul.f32 %v263, %v346
        %v352 = vmul.f32 %v264, %v346
        %v353 = vmul.f32 %v265, %v346
        %v354 = vmul.f32 %v266, %v346
        %v355 = vmul.f32 %v267, %v346
        %v356 = vmul.f32 %v268, %v347
        %v357 = vmul.f32 %v269, %v347
        %v358 = vmul.f32 %v270, %v347
        %v359 = vmul.f32 %v271, %v347
        %v360 = vmul.f32 %v272, %v347
        %v361 = vmul.f32 %v273, %v347
        %v362 = vmul.f32 %v274, %v348
        %v363 = vmul.f32 %v275, %v348
        %v364 = vmul.f32 %v276, %v348
        %v365 = vmul.f32 %v277, %v348
        %v366 = vmul.f32 %v278, %v348
        %v367 = vmul.f32 %v279, %v348
        %v368 = vmul.f32 %v280, %v349
        %v369 = vmul.f32 %v281, %v349
        %v370 = vmul.f32 %v282, %v349
        %v371 = vmul.f32 %v283, %v349
        %v372 = vmul.f32 %v284, %v349
        %v373 = vmul.f32 %v285, %v349
        %v374 = vld [vmem:[#allocation5] sm:$0x3f]
        %v376 = vlaneseq
        %v377 = vshrl.u32 %v376, 7
        %v378 = vsub.s32 0, %v377
        %v379 = vrot.slane %v374, %v378
        %v380 = vlaneseq
        %v381 = vshrl.u32 %v380, 7
        %v382 = vsub.s32 1, %v381
        %v383 = vrot.slane %v374, %v382
        %v384 = vlaneseq
        %v385 = vshrl.u32 %v384, 7
        %v386 = vsub.s32 2, %v385
        %v387 = vrot.slane %v374, %v386
        %v388 = vlaneseq
        %v389 = vshrl.u32 %v388, 7
        %v390 = vsub.s32 3, %v389
        %v391 = vrot.slane %v374, %v390
        %v392 = vlaneseq
        %v393 = vshrl.u32 %v392, 7
        %v394 = vsub.s32 4, %v393
        %v395 = vrot.slane %v374, %v394
        %v396 = vlaneseq
        %v397 = vshrl.u32 %v396, 7
        %v398 = vsub.s32 5, %v397
        %v399 = vrot.slane %v374, %v398
        %v406 = vmul.f32 %v350, %v379
        %v407 = vmul.f32 %v351, %v383
        %v408 = vmul.f32 %v352, %v387
        %v409 = vmul.f32 %v353, %v391
        %v410 = vmul.f32 %v354, %v395
        %v411 = vmul.f32 %v355, %v399
        %v412 = vmul.f32 %v356, %v379
        %v413 = vmul.f32 %v357, %v383
        %v414 = vmul.f32 %v358, %v387
        %v415 = vmul.f32 %v359, %v391
        %v416 = vmul.f32 %v360, %v395
        %v417 = vmul.f32 %v361, %v399
        %v418 = vmul.f32 %v362, %v379
        %v419 = vmul.f32 %v363, %v383
        %v420 = vmul.f32 %v364, %v387
        %v421 = vmul.f32 %v365, %v391
        %v422 = vmul.f32 %v366, %v395
        %v423 = vmul.f32 %v367, %v399
        %v424 = vmul.f32 %v368, %v379
        %v425 = vmul.f32 %v369, %v383
        %v426 = vmul.f32 %v370, %v387
        %v427 = vmul.f32 %v371, %v391
        %v428 = vmul.f32 %v372, %v395
        %v429 = vmul.f32 %v373, %v399
        %v430 = vld [vmem:[%s2] sm:$0x3f]
        %v432 = vlaneseq
        %v433 = vshrl.u32 %v432, 7
        %v434 = vsub.s32 0, %v433
        %v435 = vrot.slane %v430, %v434
        %v436 = vlaneseq
        %v437 = vshrl.u32 %v436, 7
        %v438 = vsub.s32 1, %v437
        %v439 = vrot.slane %v430, %v438
        %v440 = vlaneseq
        %v441 = vshrl.u32 %v440, 7
        %v442 = vsub.s32 2, %v441
        %v443 = vrot.slane %v430, %v442
        %v444 = vlaneseq
        %v445 = vshrl.u32 %v444, 7
        %v446 = vsub.s32 3, %v445
        %v447 = vrot.slane %v430, %v446
        %v448 = vlaneseq
        %v449 = vshrl.u32 %v448, 7
        %v450 = vsub.s32 4, %v449
        %v451 = vrot.slane %v430, %v450
        %v452 = vlaneseq
        %v453 = vshrl.u32 %v452, 7
        %v454 = vsub.s32 5, %v453
        %v455 = vrot.slane %v430, %v454
        %v462 = vadd.f32 %v406, %v435
        %v463 = vadd.f32 %v407, %v439
        %v464 = vadd.f32 %v408, %v443
        %v465 = vadd.f32 %v409, %v447
        %v466 = vadd.f32 %v410, %v451
        %v467 = vadd.f32 %v411, %v455
        %v468 = vadd.f32 %v412, %v435
        %v469 = vadd.f32 %v413, %v439
        %v470 = vadd.f32 %v414, %v443
        %v471 = vadd.f32 %v415, %v447
        %v472 = vadd.f32 %v416, %v451
        %v473 = vadd.f32 %v417, %v455
        %v474 = vadd.f32 %v418, %v435
        %v475 = vadd.f32 %v419, %v439
        %v476 = vadd.f32 %v420, %v443
        %v477 = vadd.f32 %v421, %v447
        %v478 = vadd.f32 %v422, %v451
        %v479 = vadd.f32 %v423, %v455
        %v480 = vadd.f32 %v424, %v435
        %v481 = vadd.f32 %v425, %v439
        %v482 = vadd.f32 %v426, %v443
        %v483 = vadd.f32 %v427, %v447
        %v484 = vadd.f32 %v428, %v451
        %v485 = vadd.f32 %v429, %v455
        %v486 = vpack.c.bf16 %v468, %v462
        %v487 = vpack.c.bf16 %v469, %v463
        %v488 = vpack.c.bf16 %v470, %v464
        %v489 = vpack.c.bf16 %v471, %v465
        %v490 = vpack.c.bf16 %v472, %v466
        %v491 = vpack.c.bf16 %v473, %v467
        %v492 = vpack.c.bf16 %v480, %v474
        %v493 = vpack.c.bf16 %v481, %v475
        %v494 = vpack.c.bf16 %v482, %v476
        %v495 = vpack.c.bf16 %v483, %v477
        %v496 = vpack.c.bf16 %v484, %v478
        %v497 = vpack.c.bf16 %v485, %v479
        %v510 = vunpack.c.l.b16 %v486
        %v511 = vunpack.c.l.b16 %v487
        %v512 = vunpack.c.l.b16 %v488
        %v513 = vunpack.c.l.b16 %v489
        %v514 = vunpack.c.l.b16 %v490
        %v515 = vunpack.c.l.b16 %v491
        %v516 = vunpack.c.h.b16 %v486
        %v517 = vunpack.c.h.b16 %v487
        %v518 = vunpack.c.h.b16 %v488
        %v519 = vunpack.c.h.b16 %v489
        %v520 = vunpack.c.h.b16 %v490
        %v521 = vunpack.c.h.b16 %v491
        %v522 = vunpack.c.l.b16 %v492
        %v523 = vunpack.c.l.b16 %v493
        %v524 = vunpack.c.l.b16 %v494
        %v525 = vunpack.c.l.b16 %v495
        %v526 = vunpack.c.l.b16 %v496
        %v527 = vunpack.c.l.b16 %v497
        %v528 = vunpack.c.h.b16 %v492
        %v529 = vunpack.c.h.b16 %v493
        %v530 = vunpack.c.h.b16 %v494
        %v531 = vunpack.c.h.b16 %v495
        %v532 = vunpack.c.h.b16 %v496
        %v533 = vunpack.c.h.b16 %v497
        %v534 = vpack.c.b16 %v511, %v510
        %v535 = vpack.c.b16 %v513, %v512
        %v536 = vpack.c.b16 %v515, %v514
        %v537 = vpack.c.b16 %v517, %v516
        %v538 = vpack.c.b16 %v519, %v518
        %v539 = vpack.c.b16 %v521, %v520
        %v540 = vpack.c.b16 %v523, %v522
        %v541 = vpack.c.b16 %v525, %v524
        %v542 = vpack.c.b16 %v527, %v526
        %v543 = vpack.c.b16 %v529, %v528
        %v544 = vpack.c.b16 %v531, %v530
        %v545 = vpack.c.b16 %v533, %v532
        %558 = vst [vmem:[%s202] sm:$0xff] %v534
        %559 = vst [vmem:[%s202 + $0x8] sm:$0xff] %v535
        %560 = vst [vmem:[%s202 + $0x10] sm:$0xff] %v536
        %561 = vst [vmem:[%s202 + $0x18] sm:$0xff] %v537
        %562 = vst [vmem:[%s202 + $0x20] sm:$0xff] %v538
        %563 = vst [vmem:[%s202 + $0x28] sm:$0xff] %v539
        %564 = vst [vmem:[%s202 + $0x30] sm:$0xff] %v540
        %565 = vst [vmem:[%s202 + $0x38] sm:$0xff] %v541
        %566 = vst [vmem:[%s202 + $0x40] sm:$0xff] %v542
        %567 = vst [vmem:[%s202 + $0x48] sm:$0xff] %v543
        %568 = vst [vmem:[%s202 + $0x50] sm:$0xff] %v544
        %569 = vst [vmem:[%s202 + $0x58] sm:$0xff] %v545
        %s570 = sand.u32 %s97, 1
        %s571 = scalar_lea.sflag [#allocation4], %s570
        %s572 = sand.u32 %s97, 1
        %s573 = smul.addr %s572, 96
        %s574 = scalar_lea.vmem [#allocation7], %s573
        // Predicated region
        $region41: #{tpu_custom_call.1} parent=31 // pred_check
          %p575 = pneg %p107
        $region42: #{tpu_custom_call.1} parent=31 // pred_check_branch
          %577 = sbr.rel (%p575) target = $region44
        $region43: #{tpu_custom_call.1} parent=31 // pred_region
          %s578 = smul.u32 4, %s21
          %s580 = ssub.s32 1536, 1536
          %581 = vsyncadd %s571, %s580
          %s582 = smul.addr %s578, 6
          %s583 = smul.addr %s582, 64
          %s584 = scalar_lea.hbm %s3, %s583
          %s585 = sshll.u32 %s574, 4
          %s586 = int_to_ptr.vmem [resolvable:$true] %s585
          %591 = dma.vmem_to_hbm [thread:$0]  %s586, 1536, %s584, %s571, 384, 384, 24
        $region44: #{tpu_custom_call.1} parent=31 // pred_fallthru
          _
      $region32: #{tpu_custom_call.1} parent=5 // pred_fallthru
        _
      %p592 = scmp.le.s32.totalorder 2, %s16
      // Predicated region
      $region45: #{tpu_custom_call.1} parent=5 // pred_check
        %p593 = pneg %p592
      $region46: #{tpu_custom_call.1} parent=5 // pred_check_branch
        %595 = sbr.rel (%p593) target = $region48
      $region47: #{tpu_custom_call.1} parent=5 // pred_region
        %s596 = ssub.s32 %s16, 2
        // Predicated region
        $region49: #{tpu_custom_call.1} parent=47 // pred_check
          %p597 = pneg %p113
        $region50: #{tpu_custom_call.1} parent=47 // pred_check_branch
          %599 = sbr.rel (%p597) target = $region52
        $region51: #{tpu_custom_call.1} parent=47 // pred_region
          %s600 = sand.u32 %s98, 1
          %s601 = scalar_lea.sflag [#allocation4], %s600
          %s602 = sand.u32 %s98, 1
          %s603 = smul.addr %s602, 96
          %s604 = scalar_lea.vmem [#allocation7], %s603
          %605 = dma.done %s601, 1536
        $region52: #{tpu_custom_call.1} parent=47 // pred_fallthru
          _
      $region48: #{tpu_custom_call.1} parent=5 // pred_fallthru
        _
    $region6: #{tpu_custom_call.1} parent=1 // loop_footer
      %s20 = sadd.s32 1, %s16
    $region7: #{tpu_custom_call.1} parent=1 // loop_footer_branch
      %15 = sbr.rel target = $region3
    $region8: #{tpu_custom_call.1} parent=1 // loop_exit
      _
    %606 = vsyncpa [#allocation3], 1
    %s607 = scalar_lea.sflag [#allocation3], 1
    %608 = vsyncpa %s607, 1
    %609 = vsyncpa [#allocation6], 1
    %610 = vsyncpa [#allocation4], 1
    %s611 = scalar_lea.sflag [#allocation4], 1
    %612 = vsyncpa %s611, 1

</llo_original>
